<compile_context>
chip_gen: v7x
topology: tpu7x:2x2x1
jax: 0.10.0
libtpu: 0.0.40
codegen_flags: <defaults>
</compile_context>

<pallas_src>
import functools

import jax
import jax.numpy as jnp
from jax.experimental import pallas as pl
from jax.experimental.pallas import tpu as pltpu

_LANE = 128
_SUBLANE = 8
_TILE_ROWS = 1024                       # (1024, 128) f32 tile = 512 KiB
_FAST_PATH_MAX_BYTES = 4 * 1024 * 1024  # resident fast-path gate (v7x-safe)


def _round_up(n, m):
    return ((n + m - 1) // m) * m


# --------------------------- fast path (resident) ---------------------------
def _centered_fused_kernel(x_ref, o_ref, *, inv_count):
    x = x_ref[...].astype(jnp.float32)
    # Two-stage reduction: VPU adds across row-chunks into an (8,128) partial,
    # then one cross-lane (XLU) reduce. Pad zeros are excluded via inv_count.
    partial = jnp.sum(x.reshape(-1, _SUBLANE, _LANE), axis=0)
    mean = jnp.sum(partial) * inv_count
    o_ref[...] = (x - mean).astype(o_ref.dtype)


# ------------------- tiled path, pass 1: partial-sum reduce ------------------
def _partial_sum_kernel(x_ref, acc_ref, *, tile_rows, rows_valid):
    @pl.when(pl.program_id(0) == 0)
    def _init():
        acc_ref[...] = jnp.zeros_like(acc_ref)

    x = x_ref[...].astype(jnp.float32)
    if rows_valid is not None:
        # Ragged last tile: rows past the (already zero-padded) slab are
        # out-of-bounds garbage reads -> mask them out of the sum.
        row = (jax.lax.broadcasted_iota(jnp.int32, x.shape, 0)
               + pl.program_id(0) * tile_rows)
        x = jnp.where(row < rows_valid, x, 0.0)
    # VPU-only accumulation into a resident (8, 128) accumulator; the single
    # XLU reduce happens once, outside the streaming loop.
    acc_ref[...] += jnp.sum(x.reshape(-1, _SUBLANE, _LANE), axis=0)


# ------------------ tiled path, pass 2: broadcast subtract -------------------
def _subtract_kernel(mean_ref, x_ref, o_ref):
    mean = mean_ref[0]  # f32 scalar from SMEM, splat-broadcast to the tile
    o_ref[...] = (x_ref[...].astype(jnp.float32) - mean).astype(o_ref.dtype)


def centered_layer(x, *, fast_path_max_bytes=_FAST_PATH_MAX_BYTES,
                   tile_rows=_TILE_ROWS):
    """Equivalent of PyTorch CenteredLayer.forward: x - x.mean() (global mean)."""
    orig_shape = x.shape
    orig_dtype = x.dtype
    total = int(x.size)
    itemsize = x.dtype.itemsize
    inv_count = 1.0 / float(total)

    # Lane+sublane-dense slab: (rows, 128) with rows a multiple of 8.
    rows = pl.cdiv(total, _LANE)
    rows_p = _round_up(max(rows, 1), _SUBLANE)
    padded_total = rows_p * _LANE

    flat = x.reshape(-1)
    if padded_total != total:
        flat = jnp.pad(flat, (0, padded_total - total))  # zeros: sum-neutral
    x2d = flat.reshape(rows_p, _LANE)
    slab_bytes = padded_total * itemsize

    if slab_bytes <= fast_path_max_bytes:
        # ---- fast path: whole slab resident, 1 HBM read + 1 HBM write ----
        out2d = pl.pallas_call(
            functools.partial(_centered_fused_kernel, inv_count=inv_count),
            out_shape=jax.ShapeDtypeStruct(x2d.shape, orig_dtype),
            grid_spec=pltpu.PrefetchScalarGridSpec(
                num_scalar_prefetch=0,
                grid=(1,),
                in_specs=[pl.BlockSpec(x2d.shape, lambda i: (0, 0))],
                out_specs=pl.BlockSpec(x2d.shape, lambda i: (0, 0)),
            ),
            compiler_params=pltpu.CompilerParams(
                dimension_semantics=("arbitrary",)),
            cost_estimate=pl.CostEstimate(
                flops=2 * total, transcendentals=0,
                bytes_accessed=int(2 * total * itemsize)),
        )(x2d)
    else:
        # ---- tiled two-pass path: pipelined, works for any size ----
        tile_r = min(_round_up(tile_rows, _SUBLANE), rows_p)
        num_tiles = pl.cdiv(rows_p, tile_r)
        ragged = (rows_p % tile_r) != 0

        # Pass 1: streaming reduce -> resident (8,128) f32 partial sums.
        partial = pl.pallas_call(
            functools.partial(_partial_sum_kernel, tile_rows=tile_r,
                              rows_valid=rows_p if ragged else None),
            out_shape=jax.ShapeDtypeStruct((_SUBLANE, _LANE), jnp.float32),
            grid_spec=pltpu.PrefetchScalarGridSpec(
                num_scalar_prefetch=0,
                grid=(num_tiles,),
                in_specs=[pl.BlockSpec((tile_r, _LANE), lambda i: (i, 0))],
                out_specs=pl.BlockSpec((_SUBLANE, _LANE), lambda i: (0, 0)),
            ),
            compiler_params=pltpu.CompilerParams(
                dimension_semantics=("arbitrary",)),
            cost_estimate=pl.CostEstimate(
                flops=total, transcendentals=0,
                bytes_accessed=int(total * itemsize)),
        )(x2d)

        # Tiny (1 KiB) final reduce + divide by the TRUE element count.
        mean = (jnp.sum(partial) * inv_count).astype(jnp.float32).reshape(1)

        # Pass 2: tiled elementwise subtract; fully parallel grid axis
        # (Mosaic can shard it across v7x's 2 TensorCores).
        out2d = pl.pallas_call(
            _subtract_kernel,
            out_shape=jax.ShapeDtypeStruct(x2d.shape, orig_dtype),
            grid_spec=pltpu.PrefetchScalarGridSpec(
                num_scalar_prefetch=0,
                grid=(num_tiles,),
                in_specs=[
                    pl.BlockSpec(memory_space=pltpu.MemorySpace.SMEM),
                    pl.BlockSpec((tile_r, _LANE), lambda i: (i, 0)),
                ],
                out_specs=pl.BlockSpec((tile_r, _LANE), lambda i: (i, 0)),
            ),
            compiler_params=pltpu.CompilerParams(
                dimension_semantics=("parallel",)),
            cost_estimate=pl.CostEstimate(
                flops=total, transcendentals=0,
                bytes_accessed=int(2 * total * itemsize)),
        )(mean, x2d)

    out_flat = out2d.reshape(-1)
    if padded_total != total:
        out_flat = out_flat[:total]
    return out_flat.reshape(orig_shape)


if __name__ == "__main__":
    key = jax.random.PRNGKey(0)
    k1, k2 = jax.random.split(key)

    # 1) Small 4D input (NCHW-style feature map) -> resident fast path.
    x_small = jax.random.normal(k1, (2, 4, 16, 16), dtype=jnp.float32)
    y_small = jax.block_until_ready(centered_layer(x_small))
    ref_small = x_small - jnp.mean(x_small)
    assert y_small.shape == x_small.shape and y_small.dtype == x_small.dtype
    assert jnp.allclose(y_small, ref_small, atol=1e-5, rtol=1e-5)
    assert abs(float(jnp.mean(y_small))) < 1e-5

    # 2) Small non-128-multiple input, forced onto the tiled two-pass path
    #    (exercises padding, multi-tile grid, ragged-tile masking, SMEM mean).
    x_odd = jax.random.normal(k2, (2, 4, 25, 25), dtype=jnp.float32)
    y_odd = jax.block_until_ready(
        centered_layer(x_odd, fast_path_max_bytes=0, tile_rows=16))
    ref_odd = x_odd - jnp.mean(x_odd)
    assert y_odd.shape == x_odd.shape and y_odd.dtype == x_odd.dtype
    assert jnp.allclose(y_odd, ref_odd, atol=1e-5, rtol=1e-5)
    assert abs(float(jnp.mean(y_odd))) < 1e-5

    print("KERNEL_OK")
</pallas_src>

<mosaic_0001>
module attributes {stable_mosaic.version = 11 : i64} {
  func.func @_centered_fused_kernel(%arg0: i32, %arg1: memref<16x128xf32, #tpu.memory_space<vmem>>, %arg2: memref<16x128xf32, #tpu.memory_space<vmem>>) attributes {dimension_semantics = [#tpu.dimension_semantics<arbitrary>], iteration_bounds = array<i64: 1>, scalar_prefetch = 0 : i64, scratch_operands = 0 : i64, tpu.core_type = #tpu.core_type<tc>, window_params = [{pipeline_mode = #tpu.pipeline_mode<synchronous>, transform_indices = @transform_0, window_bounds = array<i64: 16, 128>}, {pipeline_mode = #tpu.pipeline_mode<synchronous>, transform_indices = @transform_1, window_bounds = array<i64: 16, 128>}]} {
    %c0 = arith.constant 0 : index
    %c0_0 = arith.constant 0 : index
    %0 = vector.load %arg1[%c0, %c0_0] : memref<16x128xf32, #tpu.memory_space<vmem>>, vector<16x128xf32>
    %1 = vector.shape_cast %0 : vector<16x128xf32> to vector<2x8x128xf32>
    %cst = arith.constant dense<0.000000e+00> : vector<8x128xf32>
    %2 = vector.multi_reduction <add>, %1, %cst [0] : vector<2x8x128xf32> to vector<8x128xf32>
    %3 = vector.shape_cast %2 : vector<8x128xf32> to vector<1x8x128xf32>
    %cst_1 = arith.constant dense<0.000000e+00> : vector<1xf32>
    %4 = vector.multi_reduction <add>, %3, %cst_1 [1, 2] : vector<1x8x128xf32> to vector<1xf32>
    %5 = vector.shape_cast %4 : vector<1xf32> to vector<1x1x1xf32>
    %6 = vector.extract %5[0, 0, 0] : f32 from vector<1x1x1xf32>
    %cst_2 = arith.constant 4.8828125E-4 : f32
    %7 = arith.mulf %6, %cst_2 : f32
    %8 = vector.broadcast %7 : f32 to vector<16x128xf32>
    %9 = arith.subf %0, %8 : vector<16x128xf32>
    %c0_3 = arith.constant 0 : index
    %c0_4 = arith.constant 0 : index
    %10 = vector.load %arg2[%c0_3, %c0_4] : memref<16x128xf32, #tpu.memory_space<vmem>>, vector<16x128xf32>
    tpu.vector_store %arg2[%c0_3, %c0_4], %9 {strides = array<i32>} : memref<16x128xf32, #tpu.memory_space<vmem>>, vector<16x128xf32>,
    return
  }
  func.func @transform_0(%arg0: i32) -> (i32, i32) {
    %c0_i32 = arith.constant 0 : i32
    %c0_i32_0 = arith.constant 0 : i32
    %c0_i32_1 = arith.constant 0 : i32
    return %c0_i32, %c0_i32_0 : i32, i32
  }
  func.func @transform_1(%arg0: i32) -> (i32, i32) {
    %c0_i32 = arith.constant 0 : i32
    %c0_i32_0 = arith.constant 0 : i32
    %c0_i32_1 = arith.constant 0 : i32
    return %c0_i32, %c0_i32_0 : i32, i32
  }
}

</mosaic_0001>

<llo_original>
// kernel: tpu_custom_call.1
$region0: #{tpu_custom_call.1}
  #allocation0 [shape = 'u32[]', space=smem, size = 0x4, offset = 0x4, fixed_abs, tag = 'smem constant byte address 0x4 - core index']
  #allocation1 [shape = 'u32[144,128]{1,0:T(1,128)}', space=vmem, size = 0x12000, scoped, tag = 'internal scratch']
  %s0 = inlined_call_operand.hbm [shape: f32[16,128], index: 0, kind: input, shape index: {}]
  %s1 = inlined_call_operand.hbm [shape: f32[16,128], index: 1, kind: output, shape index: {}]
  %s2 = sld [smem:[#allocation0]]
  $region18: #{tpu_custom_call.1} parent=0
    _
  %s4 = ssub.s32 1, %s2
  %s5 = scalar_select 0, %s4, %s2
  $region1: #{tpu_custom_call.1} parent=0
    #allocation2 [shape = 'u8[8192]{0}', space=vmem, size = 0x2000, scoped, tag = 'input window, operand 0, single buffered']
    #allocation3 [shape = 's32[1]{0}', space=sflag, size = 0x4, scoped, tag = 'scoped memory for tpu_custom_call.1']
    #allocation4 [shape = 's32[1]{0}', space=sflag, size = 0x4, scoped, tag = 'scoped memory for tpu_custom_call.1']
    #allocation5 [shape = 'u8[8192]{0}', space=vmem, size = 0x2000, scoped, tag = 'output window, operand 0, single buffered']
    %6 = vsyncpa [#allocation3], 0
    %7 = vsyncpa [#allocation4], 0
    // Predicated region
    $region2: #{tpu_custom_call.1} parent=1 // pred_check
      _
    $region3: #{tpu_custom_call.1} parent=1 // pred_check_branch
      %9 = sbr.rel (0) target = $region5
    $region4: #{tpu_custom_call.1} parent=1 // pred_region
      %s11 = ssub.s32 256, 256
      %12 = vsyncadd [#allocation3], %s11
      %s13 = sshll.u32 [#allocation2], 4
      %s14 = int_to_ptr.vmem [resolvable:$true] %s13
      %19 = dma.hbm_to_vmem [thread:$0]  %s0, 256, %s14, [#allocation3], 128, 128, 8
    $region5: #{tpu_custom_call.1} parent=1 // pred_fallthru
      _
    // Predicated region
    $region6: #{tpu_custom_call.1} parent=1 // pred_check
      _
    $region7: #{tpu_custom_call.1} parent=1 // pred_check_branch
      %21 = sbr.rel (0) target = $region9
    $region8: #{tpu_custom_call.1} parent=1 // pred_region
      %22 = dma.done [#allocation3], 256
    $region9: #{tpu_custom_call.1} parent=1 // pred_fallthru
      _
    %v23 = vld [vmem:[#allocation2] sm:$0xff]
    %v24 = vld [vmem:[#allocation2 + $0x8] sm:$0xff]
    %v25 = vadd.f32 %v23, %v24
    %26 = vadd.xlane.f32.xlu0 %v25
    %v27 = vpop.xlane.xlu0 %26
    %v28 = vrot.slane %v27, 4
    %v29 = vadd.f32 %v27, %v28
    %v30 = vrot.slane %v29, 2
    %v31 = vadd.f32 %v29, %v30
    %v32 = vrot.slane %v31, 1
    %v33 = vadd.f32 %v31, %v32
    %s34 = vtos %v33
    %s35 = smul.f32 %s34, 0.00048828125
    %v36 = vstv %s35
    %v37 = vsub.f32 %v23, %v36
    %v38 = vsub.f32 %v24, %v36
    %39 = vst [vmem:[#allocation5] sm:$0xff] %v37
    %40 = vst [vmem:[#allocation5 + $0x8] sm:$0xff] %v38
    // Predicated region
    $region10: #{tpu_custom_call.1} parent=1 // pred_check
      _
    $region11: #{tpu_custom_call.1} parent=1 // pred_check_branch
      %42 = sbr.rel (0) target = $region13
    $region12: #{tpu_custom_call.1} parent=1 // pred_region
      %s44 = ssub.s32 256, 256
      %45 = vsyncadd [#allocation4], %s44
      %s46 = sshll.u32 [#allocation5], 4
      %s47 = int_to_ptr.vmem [resolvable:$true] %s46
      %52 = dma.vmem_to_hbm [thread:$0]  %s47, 256, %s1, [#allocation4], 128, 128, 8
    $region13: #{tpu_custom_call.1} parent=1 // pred_fallthru
      _
    // Predicated region
    $region14: #{tpu_custom_call.1} parent=1 // pred_check
      _
    $region15: #{tpu_custom_call.1} parent=1 // pred_check_branch
      %54 = sbr.rel (0) target = $region17
    $region16: #{tpu_custom_call.1} parent=1 // pred_region
      %55 = dma.done [#allocation4], 256
    $region17: #{tpu_custom_call.1} parent=1 // pred_fallthru
      _
    %56 = vsyncpa [#allocation3], 1
    %57 = vsyncpa [#allocation4], 1

</llo_original>
